<compile_context>
chip_gen: v6e
topology: v6e:2x2x1
jax: 0.10.0
libtpu: 0.0.40
codegen_flags: <defaults>
</compile_context>

<pallas_src>
import jax
import jax.numpy as jnp
from jax.experimental import pallas as pl
from jax.experimental.pallas import tpu as pltpu


ROWS_PER_STEP = 8          # one f32 sublane tile of output rows per grid step
LANE = 128                 # lane width; em_size padded to a multiple of this

# Resident-table strategy is only used while the table comfortably fits the
# smallest default scoped-VMEM budget (v5e: 16 MiB) even with double buffers.
_RESIDENT_TABLE_MAX_BYTES = 8 * 1024 * 1024


def _emb_gather_kernel(idx_ref, table_ref, out_ref):
    """Gather ROWS_PER_STEP rows of the resident table into one output tile.

    idx_ref:   (batch_padded,) int32 in SMEM (scalar prefetch)
    table_ref: (num_embeddings, em_pad) full table, resident in VMEM
    out_ref:   (ROWS_PER_STEP, em_pad) output tile for this grid step
    """
    base = pl.program_id(0) * ROWS_PER_STEP
    # Short static loop (unrolled) -> dynamic row read from VMEM, dense store.
    for r in range(ROWS_PER_STEP):
        row = idx_ref[base + r]
        out_ref[pl.ds(r, 1), :] = table_ref[pl.ds(row, 1), :]


def style_emb_encoder_forward(hyperparameters, embedding_table):
    """Pallas implementation of StyleEmbEncoder.forward.

    hyperparameters: int array of shape (batch, 1)
    embedding_table: float array of shape (num_embeddings, em_size)
    returns: (batch, em_size) array, dtype of embedding_table
    """
    assert hyperparameters.ndim == 2 and hyperparameters.shape[1] == 1
    num_embeddings, em_size = embedding_table.shape
    batch = hyperparameters.shape[0]

    indices = jnp.squeeze(hyperparameters, axis=1).astype(jnp.int32)  # (batch,)
    # PyTorch nn.Embedding raises on out-of-range indices; clamp here so the
    # in-kernel dynamic read can never walk off the resident table.
    indices = jnp.clip(indices, 0, num_embeddings - 1)

    table_bytes = num_embeddings * em_size * embedding_table.dtype.itemsize
    if table_bytes > _RESIDENT_TABLE_MAX_BYTES:
        # Very large tables don't fit the resident-in-VMEM strategy (notably on
        # v7x with 64 MiB physical VMEM); a plain XLA gather is the right tool
        # for a standalone lookup of that size.
        return jnp.take(embedding_table, indices, axis=0)

    # Pad batch to a multiple of 8 (sublane-dense output tiles) and em_size to
    # a multiple of 128 (lane-dense, unmasked stores).  Padding rows gather
    # row 0 and are sliced off afterwards.
    batch_pad = -(-batch // ROWS_PER_STEP) * ROWS_PER_STEP
    em_pad = -(-em_size // LANE) * LANE
    idx_padded = jnp.pad(indices, (0, batch_pad - batch))
    table = embedding_table
    if em_pad != em_size:
        table = jnp.pad(table, ((0, 0), (0, em_pad - em_size)))

    grid_spec = pltpu.PrefetchScalarGridSpec(
        num_scalar_prefetch=1,                  # indices land in SMEM
        grid=(batch_pad // ROWS_PER_STEP,),
        in_specs=[
            # Whole table as a single block; same block index every step, so
            # Pallas DMAs it from HBM exactly once and keeps it resident.
            pl.BlockSpec((num_embeddings, em_pad), lambda i, idx_ref: (0, 0)),
        ],
        out_specs=pl.BlockSpec(
            (ROWS_PER_STEP, em_pad), lambda i, idx_ref: (i, 0)
        ),
    )

    out = pl.pallas_call(
        _emb_gather_kernel,
        grid_spec=grid_spec,
        out_shape=jax.ShapeDtypeStruct((batch_pad, em_pad), table.dtype),
        compiler_params=pltpu.CompilerParams(
            # Each step writes its own output block, no accumulator -> legal
            # to mark parallel; shards across both TCs on v7x.
            dimension_semantics=("parallel",),
        ),
    )(idx_padded, table)

    return out[:batch, :em_size]


if __name__ == "__main__":
    key = jax.random.PRNGKey(0)
    k_emb, k_idx = jax.random.split(key)

    num_hyperparameters = 1       # module asserts == 1
    em_size = 128                 # embedding dim (lane-dense)
    num_embeddings = 100          # default from module
    batch = 8

    # Deterministic "nn.Embedding" weight (PyTorch inits N(0,1)).
    embedding_table = jax.random.normal(
        k_emb, (num_embeddings, em_size), dtype=jnp.float32
    )

    # hyperparameters: (batch, num_hyperparameters) integer indices.
    hyperparameters = jax.random.randint(
        k_idx, (batch, num_hyperparameters), 0, num_embeddings, dtype=jnp.int32
    )

    out = style_emb_encoder_forward(hyperparameters, embedding_table)
    out = jax.block_until_ready(out)

    # Reference check (plain JAX gather).
    ref = jnp.take(embedding_table, jnp.squeeze(hyperparameters, axis=1), axis=0)
    assert out.shape == (batch, em_size)
    assert jnp.allclose(out, ref), "mismatch vs. reference embedding lookup"

    # Also check a non-multiple-of-8 batch to exercise the padding path.
    out3 = style_emb_encoder_forward(hyperparameters[:3], embedding_table)
    out3 = jax.block_until_ready(out3)
    assert jnp.allclose(out3, ref[:3]), "mismatch on padded-batch path"

    print("KERNEL_OK")
</pallas_src>

<mosaic_0001>
module attributes {stable_mosaic.version = 11 : i64} {
  func.func @_emb_gather_kernel(%arg0: i32, %arg1: memref<8xi32, #tpu.memory_space<smem>>, %arg2: memref<100x128xf32, #tpu.memory_space<vmem>>, %arg3: memref<8x128xf32, #tpu.memory_space<vmem>>) attributes {dimension_semantics = [#tpu.dimension_semantics<parallel>], iteration_bounds = array<i64: 1>, scalar_prefetch = 1 : i64, scratch_operands = 0 : i64, tpu.core_type = #tpu.core_type<tc>, window_params = [{pipeline_mode = #tpu.pipeline_mode<synchronous>, transform_indices = @transform_0, window_bounds = array<i64: 100, 128>}, {transform_indices = @transform_1, window_bounds = array<i64: 8, 128>}]} {
    %c8_i32 = arith.constant 8 : i32
    %0 = arith.muli %arg0, %c8_i32 : i32
    %c0_i32 = arith.constant 0 : i32
    %1 = arith.addi %0, %c0_i32 : i32
    %2 = arith.index_cast %1 : i32 to index
    %3 = memref.load %arg1[%2] : memref<8xi32, #tpu.memory_space<smem>>
    %4 = arith.index_cast %3 : i32 to index
    %c0 = arith.constant 0 : index
    %5 = vector.load %arg2[%4, %c0] : memref<100x128xf32, #tpu.memory_space<vmem>>, vector<1x128xf32>
    %c0_0 = arith.constant 0 : index
    %c0_1 = arith.constant 0 : index
    %6 = vector.load %arg3[%c0_0, %c0_1] : memref<8x128xf32, #tpu.memory_space<vmem>>, vector<1x128xf32>
    tpu.vector_store %arg3[%c0_0, %c0_1], %5 {strides = array<i32>} : memref<8x128xf32, #tpu.memory_space<vmem>>, vector<1x128xf32>,
    %c1_i32 = arith.constant 1 : i32
    %7 = arith.addi %0, %c1_i32 : i32
    %8 = arith.index_cast %7 : i32 to index
    %9 = memref.load %arg1[%8] : memref<8xi32, #tpu.memory_space<smem>>
    %10 = arith.index_cast %9 : i32 to index
    %c0_2 = arith.constant 0 : index
    %11 = vector.load %arg2[%10, %c0_2] : memref<100x128xf32, #tpu.memory_space<vmem>>, vector<1x128xf32>
    %c1 = arith.constant 1 : index
    %c0_3 = arith.constant 0 : index
    %12 = vector.load %arg3[%c1, %c0_3] : memref<8x128xf32, #tpu.memory_space<vmem>>, vector<1x128xf32>
    tpu.vector_store %arg3[%c1, %c0_3], %11 {strides = array<i32>} : memref<8x128xf32, #tpu.memory_space<vmem>>, vector<1x128xf32>,
    %c2_i32 = arith.constant 2 : i32
    %13 = arith.addi %0, %c2_i32 : i32
    %14 = arith.index_cast %13 : i32 to index
    %15 = memref.load %arg1[%14] : memref<8xi32, #tpu.memory_space<smem>>
    %16 = arith.index_cast %15 : i32 to index
    %c0_4 = arith.constant 0 : index
    %17 = vector.load %arg2[%16, %c0_4] : memref<100x128xf32, #tpu.memory_space<vmem>>, vector<1x128xf32>
    %c2 = arith.constant 2 : index
    %c0_5 = arith.constant 0 : index
    %18 = vector.load %arg3[%c2, %c0_5] : memref<8x128xf32, #tpu.memory_space<vmem>>, vector<1x128xf32>
    tpu.vector_store %arg3[%c2, %c0_5], %17 {strides = array<i32>} : memref<8x128xf32, #tpu.memory_space<vmem>>, vector<1x128xf32>,
    %c3_i32 = arith.constant 3 : i32
    %19 = arith.addi %0, %c3_i32 : i32
    %20 = arith.index_cast %19 : i32 to index
    %21 = memref.load %arg1[%20] : memref<8xi32, #tpu.memory_space<smem>>
    %22 = arith.index_cast %21 : i32 to index
    %c0_6 = arith.constant 0 : index
    %23 = vector.load %arg2[%22, %c0_6] : memref<100x128xf32, #tpu.memory_space<vmem>>, vector<1x128xf32>
    %c3 = arith.constant 3 : index
    %c0_7 = arith.constant 0 : index
    %24 = vector.load %arg3[%c3, %c0_7] : memref<8x128xf32, #tpu.memory_space<vmem>>, vector<1x128xf32>
    tpu.vector_store %arg3[%c3, %c0_7], %23 {strides = array<i32>} : memref<8x128xf32, #tpu.memory_space<vmem>>, vector<1x128xf32>,
    %c4_i32 = arith.constant 4 : i32
    %25 = arith.addi %0, %c4_i32 : i32
    %26 = arith.index_cast %25 : i32 to index
    %27 = memref.load %arg1[%26] : memref<8xi32, #tpu.memory_space<smem>>
    %28 = arith.index_cast %27 : i32 to index
    %c0_8 = arith.constant 0 : index
    %29 = vector.load %arg2[%28, %c0_8] : memref<100x128xf32, #tpu.memory_space<vmem>>, vector<1x128xf32>
    %c4 = arith.constant 4 : index
    %c0_9 = arith.constant 0 : index
    %30 = vector.load %arg3[%c4, %c0_9] : memref<8x128xf32, #tpu.memory_space<vmem>>, vector<1x128xf32>
    tpu.vector_store %arg3[%c4, %c0_9], %29 {strides = array<i32>} : memref<8x128xf32, #tpu.memory_space<vmem>>, vector<1x128xf32>,
    %c5_i32 = arith.constant 5 : i32
    %31 = arith.addi %0, %c5_i32 : i32
    %32 = arith.index_cast %31 : i32 to index
    %33 = memref.load %arg1[%32] : memref<8xi32, #tpu.memory_space<smem>>
    %34 = arith.index_cast %33 : i32 to index
    %c0_10 = arith.constant 0 : index
    %35 = vector.load %arg2[%34, %c0_10] : memref<100x128xf32, #tpu.memory_space<vmem>>, vector<1x128xf32>
    %c5 = arith.constant 5 : index
    %c0_11 = arith.constant 0 : index
    %36 = vector.load %arg3[%c5, %c0_11] : memref<8x128xf32, #tpu.memory_space<vmem>>, vector<1x128xf32>
    tpu.vector_store %arg3[%c5, %c0_11], %35 {strides = array<i32>} : memref<8x128xf32, #tpu.memory_space<vmem>>, vector<1x128xf32>,
    %c6_i32 = arith.constant 6 : i32
    %37 = arith.addi %0, %c6_i32 : i32
    %38 = arith.index_cast %37 : i32 to index
    %39 = memref.load %arg1[%38] : memref<8xi32, #tpu.memory_space<smem>>
    %40 = arith.index_cast %39 : i32 to index
    %c0_12 = arith.constant 0 : index
    %41 = vector.load %arg2[%40, %c0_12] : memref<100x128xf32, #tpu.memory_space<vmem>>, vector<1x128xf32>
    %c6 = arith.constant 6 : index
    %c0_13 = arith.constant 0 : index
    %42 = vector.load %arg3[%c6, %c0_13] : memref<8x128xf32, #tpu.memory_space<vmem>>, vector<1x128xf32>
    tpu.vector_store %arg3[%c6, %c0_13], %41 {strides = array<i32>} : memref<8x128xf32, #tpu.memory_space<vmem>>, vector<1x128xf32>,
    %c7_i32 = arith.constant 7 : i32
    %43 = arith.addi %0, %c7_i32 : i32
    %44 = arith.index_cast %43 : i32 to index
    %45 = memref.load %arg1[%44] : memref<8xi32, #tpu.memory_space<smem>>
    %46 = arith.index_cast %45 : i32 to index
    %c0_14 = arith.constant 0 : index
    %47 = vector.load %arg2[%46, %c0_14] : memref<100x128xf32, #tpu.memory_space<vmem>>, vector<1x128xf32>
    %c7 = arith.constant 7 : index
    %c0_15 = arith.constant 0 : index
    %48 = vector.load %arg3[%c7, %c0_15] : memref<8x128xf32, #tpu.memory_space<vmem>>, vector<1x128xf32>
    tpu.vector_store %arg3[%c7, %c0_15], %47 {strides = array<i32>} : memref<8x128xf32, #tpu.memory_space<vmem>>, vector<1x128xf32>,
    return
  }
  func.func @transform_0(%arg0: i32, %arg1: memref<8xi32, #tpu.memory_space<smem>>) -> (i32, i32) {
    %c0_i32 = arith.constant 0 : i32
    %c0_i32_0 = arith.constant 0 : i32
    %c0_i32_1 = arith.constant 0 : i32
    return %c0_i32, %c0_i32_0 : i32, i32
  }
  func.func @transform_1(%arg0: i32, %arg1: memref<8xi32, #tpu.memory_space<smem>>) -> (i32, i32) {
    %c0_i32 = arith.constant 0 : i32
    %c0_i32_0 = arith.constant 0 : i32
    return %arg0, %c0_i32 : i32, i32
  }
}

</mosaic_0001>

<llo_original>
// kernel: tpu_custom_call.1
$region0: #{tpu_custom_call.1}
  #allocation0 [shape = 'u32[]', space=smem, size = 0x4, offset = 0x4, fixed_abs, tag = 'smem constant byte address 0x4 - core index']
  #allocation1 [shape = 'u32[144,128]{1,0:T(1,128)}', space=vmem, size = 0x12000, scoped, tag = 'internal scratch']
  #allocation2 [shape = 's32[1]{0}', space=sflag, size = 0x4, scoped, tag = 'scoped memory for tpu_custom_call.1']
  #allocation3 [shape = 'u8[512]{0}', space=smem, size = 0x200, scoped, tag = 'prefetched SMEM operand 0']
  %s0 = inlined_call_operand.hbm [shape: s32[8], index: 0, kind: input, shape index: {}]
  %s1 = inlined_call_operand.hbm [shape: f32[100,128], index: 1, kind: input, shape index: {}]
  %s2 = inlined_call_operand.hbm [shape: f32[8,128], index: 2, kind: output, shape index: {}]
  %s3 = sld [smem:[#allocation0]]
  $region18: #{tpu_custom_call.1} parent=0
    _
  %s5 = ssub.s32 1, %s3
  %s6 = scalar_select 0, %s5, %s3
  %8 = dma.hbm_to_smem %s0, 16, [#allocation3], [#allocation2]
  %9 = dma.done [#allocation2], 16
  %10 = sfence
  $region1: #{tpu_custom_call.1} parent=0
    #allocation4 [shape = 'u8[53248]{0}', space=vmem, size = 0xd000, scoped, tag = 'input window, operand 1, single buffered']
    #allocation5 [shape = 's32[1]{0}', space=sflag, size = 0x4, scoped, tag = 'scoped memory for tpu_custom_call.1']
    #allocation6 [shape = 's32[1]{0}', space=sflag, size = 0x4, scoped, tag = 'scoped memory for tpu_custom_call.1']
    #allocation7 [shape = 'u8[4096]{0}', space=vmem, size = 0x1000, scoped, tag = 'output window, operand 0, single buffered']
    %11 = vsyncpa [#allocation5], 0
    %12 = vsyncpa [#allocation6], 0
    // Predicated region
    $region2: #{tpu_custom_call.1} parent=1 // pred_check
      _
    $region3: #{tpu_custom_call.1} parent=1 // pred_check_branch
      %14 = sbr.rel (0) target = $region5
    $region4: #{tpu_custom_call.1} parent=1 // pred_region
      %s16 = ssub.s32 1664, 1664
      %17 = vsyncadd [#allocation5], %s16
      %s18 = sshll.u32 [#allocation4], 4
      %s19 = int_to_ptr.vmem [resolvable:$true] %s18
      %24 = dma.hbm_to_vmem [thread:$0]  %s1, 1664, %s19, [#allocation5], 128, 128, 8
    $region5: #{tpu_custom_call.1} parent=1 // pred_fallthru
      _
    // Predicated region
    $region6: #{tpu_custom_call.1} parent=1 // pred_check
      _
    $region7: #{tpu_custom_call.1} parent=1 // pred_check_branch
      %26 = sbr.rel (0) target = $region9
    $region8: #{tpu_custom_call.1} parent=1 // pred_region
      %27 = dma.done [#allocation5], 1664
    $region9: #{tpu_custom_call.1} parent=1 // pred_fallthru
      _
    %s28 = smul.u32 0, 8
    %s29 = sld [smem:[#allocation3 + %s28]]
    %s30 = scalar_lea.vmem [#allocation4], %s29
    %v31 = vld [vmem:[%s30] sm:$0x1]
    %32 = vst [vmem:[#allocation7] sm:$0x1] %v31
    %s33 = sadd.s32 %s28, 1
    %s34 = sld [smem:[#allocation3 + %s33]]
    %s35 = scalar_lea.vmem [#allocation4], %s34
    %v36 = vld [vmem:[%s35] sm:$0x1]
    %37 = vst [vmem:[#allocation7 + $0x1] sm:$0x1] %v36
    %s38 = sadd.s32 %s28, 2
    %s39 = sld [smem:[#allocation3 + %s38]]
    %s40 = scalar_lea.vmem [#allocation4], %s39
    %v41 = vld [vmem:[%s40] sm:$0x1]
    %42 = vst [vmem:[#allocation7 + $0x2] sm:$0x1] %v41
    %s43 = sadd.s32 %s28, 3
    %s44 = sld [smem:[#allocation3 + %s43]]
    %s45 = scalar_lea.vmem [#allocation4], %s44
    %v46 = vld [vmem:[%s45] sm:$0x1]
    %47 = vst [vmem:[#allocation7 + $0x3] sm:$0x1] %v46
    %s48 = sadd.s32 %s28, 4
    %s49 = sld [smem:[#allocation3 + %s48]]
    %s50 = scalar_lea.vmem [#allocation4], %s49
    %v51 = vld [vmem:[%s50] sm:$0x1]
    %52 = vst [vmem:[#allocation7 + $0x4] sm:$0x1] %v51
    %s53 = sadd.s32 %s28, 5
    %s54 = sld [smem:[#allocation3 + %s53]]
    %s55 = scalar_lea.vmem [#allocation4], %s54
    %v56 = vld [vmem:[%s55] sm:$0x1]
    %57 = vst [vmem:[#allocation7 + $0x5] sm:$0x1] %v56
    %s58 = sadd.s32 %s28, 6
    %s59 = sld [smem:[#allocation3 + %s58]]
    %s60 = scalar_lea.vmem [#allocation4], %s59
    %v61 = vld [vmem:[%s60] sm:$0x1]
    %62 = vst [vmem:[#allocation7 + $0x6] sm:$0x1] %v61
    %s63 = sadd.s32 %s28, 7
    %s64 = sld [smem:[#allocation3 + %s63]]
    %s65 = scalar_lea.vmem [#allocation4], %s64
    %v66 = vld [vmem:[%s65] sm:$0x1]
    %67 = vst [vmem:[#allocation7 + $0x7] sm:$0x1] %v66
    // Predicated region
    $region10: #{tpu_custom_call.1} parent=1 // pred_check
      _
    $region11: #{tpu_custom_call.1} parent=1 // pred_check_branch
      %69 = sbr.rel (0) target = $region13
    $region12: #{tpu_custom_call.1} parent=1 // pred_region
      %s71 = ssub.s32 128, 128
      %72 = vsyncadd [#allocation6], %s71
      %s74 = sshll.u32 [#allocation7], 4
      %s75 = int_to_ptr.vmem [resolvable:$true] %s74
      %77 = dma.vmem_to_hbm [thread:$0]  %s75, 128, %s2, [#allocation6]
    $region13: #{tpu_custom_call.1} parent=1 // pred_fallthru
      _
    // Predicated region
    $region14: #{tpu_custom_call.1} parent=1 // pred_check
      _
    $region15: #{tpu_custom_call.1} parent=1 // pred_check_branch
      %79 = sbr.rel (0) target = $region17
    $region16: #{tpu_custom_call.1} parent=1 // pred_region
      %80 = dma.done [#allocation6], 128
    $region17: #{tpu_custom_call.1} parent=1 // pred_fallthru
      _
    %81 = vsyncpa [#allocation5], 1
    %82 = vsyncpa [#allocation6], 1

</llo_original>
